<compile_context>
chip_gen: v7x
topology: tpu7x:2x2x1
jax: 0.10.0
libtpu: 0.0.40
codegen_flags: <defaults>
</compile_context>

<pallas_src>
import functools

import jax
import jax.numpy as jnp
from jax import lax
from jax.experimental import pallas as pl
from jax.experimental.pallas import tpu as pltpu


def _round_up(x, m):
    return (x + m - 1) // m * m


def _triplet_kernel(xr_ref, xc_ref, sqr_ref, sqc_ref, tr_ref, tc_ref,
                    loss_ref, ap2_ref, an2_ref,
                    *, margin, gamma, n_valid, tm, tn):
    i = pl.program_id(0)
    j = pl.program_id(1)

    # New anchor row-tile: reset the online max/min accumulators.
    @pl.when(j == 0)
    def _init():
        ap2_ref[...] = jnp.full_like(ap2_ref, -jnp.inf)
        an2_ref[...] = jnp.full_like(an2_ref, jnp.inf)

    # (tm, tn) gram tile on the MXU; contracting dim 1 of both operands avoids
    # materializing x.T.  Original dtype (e.g. bf16) goes straight to the MXU,
    # accumulation in f32.
    gram = lax.dot_general(
        xr_ref[...], xc_ref[...],
        dimension_numbers=(((1,), (1,)), ((), ())),
        preferred_element_type=jnp.float32,
        precision=lax.Precision.HIGHEST,
    )
    # Squared pairwise distances for this tile (sqrt is deferred).
    dist2 = sqr_ref[...] + sqc_ref[...] - 2.0 * gram            # (tm, tn) f32

    same = tr_ref[...] == tc_ref[...]                           # (tm,1)==(1,tn) -> (tm,tn)
    col = j * tn + lax.broadcasted_iota(jnp.int32, (tm, tn), 1)
    valid = col < n_valid                                       # mask out padded columns

    ap_cand = jnp.where(jnp.logical_and(same, valid), dist2, -jnp.inf)
    an_cand = jnp.where(jnp.logical_and(jnp.logical_not(same), valid), dist2, jnp.inf)

    ap2_ref[...] = jnp.maximum(ap2_ref[...], jnp.max(ap_cand, axis=1, keepdims=True))
    an2_ref[...] = jnp.minimum(an2_ref[...], jnp.min(an_cand, axis=1, keepdims=True))

    # Last column tile for this row tile: clamp + sqrt on (tm,1) only,
    # then the per-anchor hinge loss (padded anchors contribute 0).
    @pl.when(j == pl.num_programs(1) - 1)
    def _finalize():
        dist_ap = jnp.sqrt(jnp.maximum(ap2_ref[...], 1e-12))    # (tm, 1)
        dist_an = jnp.sqrt(jnp.maximum(an2_ref[...], 1e-12))    # (tm, 1)
        per = jnp.maximum(0.0, margin - (dist_an - gamma * dist_ap))
        row = i * tm + lax.broadcasted_iota(jnp.int32, (tm, 1), 0)
        loss_ref[...] = jnp.where(row < n_valid, per, 0.0).astype(loss_ref.dtype)


def triplet_loss(inputs, targets, margin=0.3, gamma=1.0):
    """inputs: (n, d) float array, targets: (n,) int labels -> scalar f32 loss."""
    n, d = inputs.shape

    # Tile sizes: single tile for small batches, 256x256 tiles otherwise
    # (fits comfortably in scoped VMEM on v5e/v6e/v7x and keeps MXU tiles full).
    tm = tn = _round_up(n, 8) if n <= 256 else 256
    n_pad = _round_up(n, tm)
    d_pad = _round_up(d, 128)
    # TODO(synk): for very large feature dims (d*tm*4B*4 buffers > scoped VMEM)
    # add a k-chunk grid axis accumulating the gram tile.

    x = inputs
    if (n_pad, d_pad) != (n, d):
        x = jnp.pad(x, ((0, n_pad - n), (0, d_pad - d)))

    # Squared norms once, in f32 (kept f32 even if x is bf16).
    x_f = x.astype(jnp.float32)
    sq = jnp.sum(x_f * x_f, axis=1)
    sq_row = sq.reshape(n_pad, 1)
    sq_col = sq.reshape(1, n_pad)

    t = targets.astype(jnp.int32)
    if n_pad != n:
        t = jnp.pad(t, (0, n_pad - n), constant_values=-1)
    t_row = t.reshape(n_pad, 1)
    t_col = t.reshape(1, n_pad)

    grid = (n_pad // tm, n_pad // tn)
    kernel = functools.partial(
        _triplet_kernel,
        margin=float(margin), gamma=float(gamma),
        n_valid=int(n), tm=int(tm), tn=int(tn),
    )

    per_anchor = pl.pallas_call(
        kernel,
        out_shape=jax.ShapeDtypeStruct((n_pad, 1), jnp.float32),
        grid_spec=pltpu.PrefetchScalarGridSpec(
            num_scalar_prefetch=0,
            grid=grid,
            in_specs=[
                pl.BlockSpec((tm, d_pad), lambda i, j: (i, 0)),   # anchor rows
                pl.BlockSpec((tn, d_pad), lambda i, j: (j, 0)),   # candidate rows
                pl.BlockSpec((tm, 1), lambda i, j: (i, 0)),       # ||x_i||^2
                pl.BlockSpec((1, tn), lambda i, j: (0, j)),       # ||x_j||^2
                pl.BlockSpec((tm, 1), lambda i, j: (i, 0)),       # targets, row orient
                pl.BlockSpec((1, tn), lambda i, j: (0, j)),       # targets, col orient
            ],
            out_specs=pl.BlockSpec((tm, 1), lambda i, j: (i, 0)),
            scratch_shapes=[
                pltpu.VMEM((tm, 1), jnp.float32),   # running max squared dist (positives)
                pltpu.VMEM((tm, 1), jnp.float32),   # running min squared dist (negatives)
            ],
        ),
        compiler_params=pltpu.CompilerParams(
            dimension_semantics=("parallel", "arbitrary")),
    )(x, x, sq_row, sq_col, t_row, t_col)

    # Tiny epilogue: mean over the real anchors (padded rows were zeroed).
    return jnp.sum(per_anchor) / n


def _reference(inputs, targets, margin=0.3, gamma=1.0):
    x = inputs.astype(jnp.float32)
    sq = jnp.sum(x * x, axis=1, keepdims=True)
    gram = jnp.dot(x, x.T, precision=lax.Precision.HIGHEST)
    dist = jnp.sqrt(jnp.maximum(sq + sq.T - 2.0 * gram, 1e-12))
    mask = targets[:, None] == targets[None, :]
    dist_ap = jnp.max(jnp.where(mask, dist, -jnp.inf), axis=1)
    dist_an = jnp.min(jnp.where(mask, jnp.inf, dist), axis=1)
    return jnp.mean(jnp.maximum(0.0, margin - (dist_an - gamma * dist_ap)))


if __name__ == "__main__":
    key = jax.random.PRNGKey(0)
    k1, k2, k3 = jax.random.split(key, 3)

    # Small case: 4 identities x 2 samples, feat_dim=32 (single-tile grid).
    n, d = 8, 32
    x_small = jax.random.normal(k1, (n, d), dtype=jnp.float32)
    t_small = jnp.array([0, 0, 1, 1, 2, 2, 3, 3], dtype=jnp.int32)
    loss = triplet_loss(x_small, t_small, margin=0.3, gamma=1.0)
    jax.block_until_ready(loss)
    ref = _reference(x_small, t_small, margin=0.3, gamma=1.0)
    assert jnp.allclose(loss, ref, atol=1e-5, rtol=1e-5), (loss, ref)

    # Larger case exercising the tiled grid, online mining and padding
    # (n=300 -> padded to 512, grid (2, 2)).
    n2, d2 = 300, 40
    x_big = jax.random.normal(k2, (n2, d2), dtype=jnp.float32)
    t_big = jax.random.randint(k3, (n2,), 0, 10, dtype=jnp.int32)
    loss2 = triplet_loss(x_big, t_big, margin=0.3, gamma=1.0)
    jax.block_until_ready(loss2)
    ref2 = _reference(x_big, t_big, margin=0.3, gamma=1.0)
    assert jnp.allclose(loss2, ref2, atol=1e-4, rtol=1e-4), (loss2, ref2)

    print("KERNEL_OK")
</pallas_src>

<mosaic_0001>
module attributes {stable_mosaic.version = 11 : i64} {
  func.func @_triplet_kernel(%arg0: i32, %arg1: i32, %arg2: memref<8x128xf32, #tpu.memory_space<vmem>>, %arg3: memref<8x128xf32, #tpu.memory_space<vmem>>, %arg4: memref<8x1xf32, #tpu.memory_space<vmem>>, %arg5: memref<1x8xf32, #tpu.memory_space<vmem>>, %arg6: memref<8x1xi32, #tpu.memory_space<vmem>>, %arg7: memref<1x8xi32, #tpu.memory_space<vmem>>, %arg8: memref<8x1xf32, #tpu.memory_space<vmem>>, %arg9: memref<8x1xf32, #tpu.memory_space<vmem>>, %arg10: memref<8x1xf32, #tpu.memory_space<vmem>>) attributes {dimension_semantics = [#tpu.dimension_semantics<parallel>, #tpu.dimension_semantics<arbitrary>], iteration_bounds = array<i64: 1, 1>, scalar_prefetch = 0 : i64, scratch_operands = 2 : i64, tpu.core_type = #tpu.core_type<tc>, window_params = [{transform_indices = @transform_0, window_bounds = array<i64: 8, 128>}, {transform_indices = @transform_1, window_bounds = array<i64: 8, 128>}, {transform_indices = @transform_2, window_bounds = array<i64: 8, 1>}, {transform_indices = @transform_3, window_bounds = array<i64: 1, 8>}, {transform_indices = @transform_4, window_bounds = array<i64: 8, 1>}, {transform_indices = @transform_5, window_bounds = array<i64: 1, 8>}, {transform_indices = @transform_6, window_bounds = array<i64: 8, 1>}]} {
    %c0_i32 = arith.constant 0 : i32
    %0 = arith.cmpi eq, %arg1, %c0_i32 : i32
    %1 = arith.extui %0 : i1 to i32
    %c0_i32_0 = arith.constant 0 : i32
    %2 = arith.cmpi ne, %1, %c0_i32_0 : i32
    scf.if %2 {
      %cst_29 = arith.constant 0xFF800000 : f32
      %45 = vector.broadcast %cst_29 : f32 to vector<8x1xf32>
      %c0_30 = arith.constant 0 : index
      %c0_31 = arith.constant 0 : index
      %46 = vector.load %arg9[%c0_30, %c0_31] : memref<8x1xf32, #tpu.memory_space<vmem>>, vector<8x1xf32>
      tpu.vector_store %arg9[%c0_30, %c0_31], %45 {strides = array<i32>} : memref<8x1xf32, #tpu.memory_space<vmem>>, vector<8x1xf32>,
      %cst_32 = arith.constant 0x7F800000 : f32
      %47 = vector.broadcast %cst_32 : f32 to vector<8x1xf32>
      %c0_33 = arith.constant 0 : index
      %c0_34 = arith.constant 0 : index
      %48 = vector.load %arg10[%c0_33, %c0_34] : memref<8x1xf32, #tpu.memory_space<vmem>>, vector<8x1xf32>
      tpu.vector_store %arg10[%c0_33, %c0_34], %47 {strides = array<i32>} : memref<8x1xf32, #tpu.memory_space<vmem>>, vector<8x1xf32>,
    } else {
    }
    %c0 = arith.constant 0 : index
    %c0_1 = arith.constant 0 : index
    %3 = vector.load %arg2[%c0, %c0_1] : memref<8x128xf32, #tpu.memory_space<vmem>>, vector<8x128xf32>
    %c0_2 = arith.constant 0 : index
    %c0_3 = arith.constant 0 : index
    %4 = vector.load %arg3[%c0_2, %c0_3] : memref<8x128xf32, #tpu.memory_space<vmem>>, vector<8x128xf32>
    %cst = arith.constant dense<0.000000e+00> : vector<8x8xf32>
    %5 = tpu.matmul %3, %4, %cst {dimension_numbers = #tpu.dot_dimension_numbers<[1], [1], [0], [0], [0, 0, 1, 0], [], []>, precision = #tpu.contract_precision<fp32>} : vector<8x128xf32>, vector<8x128xf32>, vector<8x8xf32> -> vector<8x8xf32>
    %c0_4 = arith.constant 0 : index
    %c0_5 = arith.constant 0 : index
    %6 = vector.load %arg4[%c0_4, %c0_5] : memref<8x1xf32, #tpu.memory_space<vmem>>, vector<8x1xf32>
    %c0_6 = arith.constant 0 : index
    %c0_7 = arith.constant 0 : index
    %7 = vector.load %arg5[%c0_6, %c0_7] : memref<1x8xf32, #tpu.memory_space<vmem>>, vector<1x8xf32>
    %8 = vector.broadcast %6 : vector<8x1xf32> to vector<8x8xf32>
    %9 = vector.broadcast %7 : vector<1x8xf32> to vector<8x8xf32>
    %10 = arith.addf %8, %9 : vector<8x8xf32>
    %cst_8 = arith.constant 2.000000e+00 : f32
    %11 = vector.broadcast %cst_8 : f32 to vector<8x8xf32>
    %12 = arith.mulf %11, %5 : vector<8x8xf32>
    %13 = arith.subf %10, %12 : vector<8x8xf32>
    %c0_9 = arith.constant 0 : index
    %c0_10 = arith.constant 0 : index
    %14 = vector.load %arg6[%c0_9, %c0_10] : memref<8x1xi32, #tpu.memory_space<vmem>>, vector<8x1xi32>
    %c0_11 = arith.constant 0 : index
    %c0_12 = arith.constant 0 : index
    %15 = vector.load %arg7[%c0_11, %c0_12] : memref<1x8xi32, #tpu.memory_space<vmem>>, vector<1x8xi32>
    %16 = vector.broadcast %14 : vector<8x1xi32> to vector<8x8xi32>
    %17 = vector.broadcast %15 : vector<1x8xi32> to vector<8x8xi32>
    %18 = arith.cmpi eq, %16, %17 : vector<8x8xi32>
    %c8_i32 = arith.constant 8 : i32
    %19 = arith.muli %arg1, %c8_i32 : i32
    %20 = tpu.iota {dimensions = array<i32: 1>} : vector<8x8xi32>
    %21 = vector.broadcast %19 : i32 to vector<8x8xi32>
    %22 = arith.addi %21, %20 : vector<8x8xi32>
    %c8_i32_13 = arith.constant 8 : i32
    %23 = vector.broadcast %c8_i32_13 : i32 to vector<8x8xi32>
    %24 = arith.cmpi slt, %22, %23 : vector<8x8xi32>
    %25 = arith.andi %18, %24 : vector<8x8xi1>
    %cst_14 = arith.constant 0xFF800000 : f32
    %26 = vector.broadcast %cst_14 : f32 to vector<8x8xf32>
    %27 = arith.select %25, %13, %26 : vector<8x8xi1>, vector<8x8xf32>
    %cst_15 = arith.constant dense<true> : vector<8x8xi1>
    %28 = arith.xori %18, %cst_15 : vector<8x8xi1>
    %29 = arith.andi %28, %24 : vector<8x8xi1>
    %cst_16 = arith.constant 0x7F800000 : f32
    %30 = vector.broadcast %cst_16 : f32 to vector<8x8xf32>
    %31 = arith.select %29, %13, %30 : vector<8x8xi1>, vector<8x8xf32>
    %c0_17 = arith.constant 0 : index
    %c0_18 = arith.constant 0 : index
    %32 = vector.load %arg9[%c0_17, %c0_18] : memref<8x1xf32, #tpu.memory_space<vmem>>, vector<8x1xf32>
    %cst_19 = arith.constant dense<0xFF800000> : vector<8xf32>
    %33 = vector.multi_reduction <maximumf>, %27, %cst_19 [1] : vector<8x8xf32> to vector<8xf32>
    %34 = vector.shape_cast %33 : vector<8xf32> to vector<8x1xf32>
    %35 = arith.maximumf %32, %34 : vector<8x1xf32>
    %c0_20 = arith.constant 0 : index
    %c0_21 = arith.constant 0 : index
    %36 = vector.load %arg9[%c0_20, %c0_21] : memref<8x1xf32, #tpu.memory_space<vmem>>, vector<8x1xf32>
    tpu.vector_store %arg9[%c0_20, %c0_21], %35 {strides = array<i32>} : memref<8x1xf32, #tpu.memory_space<vmem>>, vector<8x1xf32>,
    %c0_22 = arith.constant 0 : index
    %c0_23 = arith.constant 0 : index
    %37 = vector.load %arg10[%c0_22, %c0_23] : memref<8x1xf32, #tpu.memory_space<vmem>>, vector<8x1xf32>
    %cst_24 = arith.constant dense<0x7F800000> : vector<8xf32>
    %38 = vector.multi_reduction <minimumf>, %31, %cst_24 [1] : vector<8x8xf32> to vector<8xf32>
    %39 = vector.shape_cast %38 : vector<8xf32> to vector<8x1xf32>
    %40 = arith.minimumf %37, %39 : vector<8x1xf32>
    %c0_25 = arith.constant 0 : index
    %c0_26 = arith.constant 0 : index
    %41 = vector.load %arg10[%c0_25, %c0_26] : memref<8x1xf32, #tpu.memory_space<vmem>>, vector<8x1xf32>
    tpu.vector_store %arg10[%c0_25, %c0_26], %40 {strides = array<i32>} : memref<8x1xf32, #tpu.memory_space<vmem>>, vector<8x1xf32>,
    %c0_i32_27 = arith.constant 0 : i32
    %42 = arith.cmpi eq, %arg1, %c0_i32_27 : i32
    %43 = arith.extui %42 : i1 to i32
    %c0_i32_28 = arith.constant 0 : i32
    %44 = arith.cmpi ne, %43, %c0_i32_28 : i32
    scf.if %44 {
      %c0_29 = arith.constant 0 : index
      %c0_30 = arith.constant 0 : index
      %45 = vector.load %arg9[%c0_29, %c0_30] : memref<8x1xf32, #tpu.memory_space<vmem>>, vector<8x1xf32>
      %cst_31 = arith.constant 9.99999996E-13 : f32
      %46 = vector.broadcast %cst_31 : f32 to vector<8x1xf32>
      %47 = arith.maximumf %45, %46 : vector<8x1xf32>
      %48 = math.sqrt %47 : vector<8x1xf32>
      %c0_32 = arith.constant 0 : index
      %c0_33 = arith.constant 0 : index
      %49 = vector.load %arg10[%c0_32, %c0_33] : memref<8x1xf32, #tpu.memory_space<vmem>>, vector<8x1xf32>
      %cst_34 = arith.constant 9.99999996E-13 : f32
      %50 = vector.broadcast %cst_34 : f32 to vector<8x1xf32>
      %51 = arith.maximumf %49, %50 : vector<8x1xf32>
      %52 = math.sqrt %51 : vector<8x1xf32>
      %cst_35 = arith.constant 1.000000e+00 : f32
      %53 = vector.broadcast %cst_35 : f32 to vector<8x1xf32>
      %54 = arith.mulf %53, %48 : vector<8x1xf32>
      %55 = arith.subf %52, %54 : vector<8x1xf32>
      %cst_36 = arith.constant 3.000000e-01 : f32
      %56 = vector.broadcast %cst_36 : f32 to vector<8x1xf32>
      %57 = arith.subf %56, %55 : vector<8x1xf32>
      %cst_37 = arith.constant 0.000000e+00 : f32
      %58 = vector.broadcast %cst_37 : f32 to vector<8x1xf32>
      %59 = arith.maximumf %58, %57 : vector<8x1xf32>
      %c8_i32_38 = arith.constant 8 : i32
      %60 = arith.muli %arg0, %c8_i32_38 : i32
      %61 = tpu.iota {dimensions = array<i32: 0>} : vector<8x1xi32>
      %62 = vector.broadcast %60 : i32 to vector<8x1xi32>
      %63 = arith.addi %62, %61 : vector<8x1xi32>
      %c8_i32_39 = arith.constant 8 : i32
      %64 = vector.broadcast %c8_i32_39 : i32 to vector<8x1xi32>
      %65 = arith.cmpi slt, %63, %64 : vector<8x1xi32>
      %cst_40 = arith.constant 0.000000e+00 : f32
      %66 = vector.broadcast %cst_40 : f32 to vector<8x1xf32>
      %67 = arith.select %65, %59, %66 : vector<8x1xi1>, vector<8x1xf32>
      %c0_41 = arith.constant 0 : index
      %c0_42 = arith.constant 0 : index
      %68 = vector.load %arg8[%c0_41, %c0_42] : memref<8x1xf32, #tpu.memory_space<vmem>>, vector<8x1xf32>
      tpu.vector_store %arg8[%c0_41, %c0_42], %67 {strides = array<i32>} : memref<8x1xf32, #tpu.memory_space<vmem>>, vector<8x1xf32>,
    } else {
    }
    return
  }
  func.func @transform_0(%arg0: i32, %arg1: i32) -> (i32, i32) {
    %c0_i32 = arith.constant 0 : i32
    %c0_i32_0 = arith.constant 0 : i32
    return %arg0, %c0_i32 : i32, i32
  }
  func.func @transform_1(%arg0: i32, %arg1: i32) -> (i32, i32) {
    %c0_i32 = arith.constant 0 : i32
    %c0_i32_0 = arith.constant 0 : i32
    return %arg1, %c0_i32 : i32, i32
  }
  func.func @transform_2(%arg0: i32, %arg1: i32) -> (i32, i32) {
    %c0_i32 = arith.constant 0 : i32
    %c0_i32_0 = arith.constant 0 : i32
    return %arg0, %c0_i32 : i32, i32
  }
  func.func @transform_3(%arg0: i32, %arg1: i32) -> (i32, i32) {
    %c0_i32 = arith.constant 0 : i32
    %c0_i32_0 = arith.constant 0 : i32
    return %c0_i32, %arg1 : i32, i32
  }
  func.func @transform_4(%arg0: i32, %arg1: i32) -> (i32, i32) {
    %c0_i32 = arith.constant 0 : i32
    %c0_i32_0 = arith.constant 0 : i32
    return %arg0, %c0_i32 : i32, i32
  }
  func.func @transform_5(%arg0: i32, %arg1: i32) -> (i32, i32) {
    %c0_i32 = arith.constant 0 : i32
    %c0_i32_0 = arith.constant 0 : i32
    return %c0_i32, %arg1 : i32, i32
  }
  func.func @transform_6(%arg0: i32, %arg1: i32) -> (i32, i32) {
    %c0_i32 = arith.constant 0 : i32
    %c0_i32_0 = arith.constant 0 : i32
    return %arg0, %c0_i32 : i32, i32
  }
}

</mosaic_0001>

<llo_original>
// kernel: tpu_custom_call.1
$region0: #{tpu_custom_call.1}
  #allocation0 [shape = 'u32[]', space=smem, size = 0x4, offset = 0x4, fixed_abs, tag = 'smem constant byte address 0x4 - core index']
  #allocation1 [shape = 'u32[144,128]{1,0:T(1,128)}', space=vmem, size = 0x12000, scoped, tag = 'internal scratch']
  #allocation2 [shape = 'f32[8,1]{1,0:T(8,128)}', space=vmem, size = 0x1000, scoped, tag = 'scratch operand']
  #allocation3 [shape = 'f32[8,1]{1,0:T(8,128)}', space=vmem, size = 0x1000, scoped, tag = 'scratch operand']
  %s0 = inlined_call_operand.vmem [shape: f32[8,128], index: 0, kind: input, shape index: {}]
  %s1 = inlined_call_operand.vmem [shape: f32[8,128], index: 1, kind: input, shape index: {}]
  %s2 = inlined_call_operand.vmem [shape: f32[8,1], index: 2, kind: input, shape index: {}]
  %s3 = inlined_call_operand.vmem [shape: f32[1,8], index: 3, kind: input, shape index: {}]
  %s4 = inlined_call_operand.vmem [shape: s32[8,1], index: 4, kind: input, shape index: {}]
  %s5 = inlined_call_operand.vmem [shape: s32[1,8], index: 5, kind: input, shape index: {}]
  %s6 = inlined_call_operand.vmem [shape: f32[8,1], index: 6, kind: output, shape index: {}]
  %s7 = sld [smem:[#allocation0]]
  $region42: #{tpu_custom_call.1} parent=0
    _
  %s9 = ssub.s32 1, %s7
  %s10 = scalar_select 0, %s9, %s7
  // Predicated region
  $region2: #{tpu_custom_call.1} parent=0 // pred_check
    _
  $region3: #{tpu_custom_call.1} parent=0 // pred_check_branch
    %12 = sbr.rel (0) target = $region5
  $region4: #{tpu_custom_call.1} parent=0 // pred_region
    _
  $region5: #{tpu_custom_call.1} parent=0 // pred_fallthru
    _
  // Predicated region
  $region6: #{tpu_custom_call.1} parent=0 // pred_check
    _
  $region7: #{tpu_custom_call.1} parent=0 // pred_check_branch
    %14 = sbr.rel (0) target = $region9
  $region8: #{tpu_custom_call.1} parent=0 // pred_region
    _
  $region9: #{tpu_custom_call.1} parent=0 // pred_fallthru
    _
  // Predicated region
  $region10: #{tpu_custom_call.1} parent=0 // pred_check
    _
  $region11: #{tpu_custom_call.1} parent=0 // pred_check_branch
    %16 = sbr.rel (0) target = $region13
  $region12: #{tpu_custom_call.1} parent=0 // pred_region
    _
  $region13: #{tpu_custom_call.1} parent=0 // pred_fallthru
    _
  // Predicated region
  $region14: #{tpu_custom_call.1} parent=0 // pred_check
    _
  $region15: #{tpu_custom_call.1} parent=0 // pred_check_branch
    %18 = sbr.rel (0) target = $region17
  $region16: #{tpu_custom_call.1} parent=0 // pred_region
    _
  $region17: #{tpu_custom_call.1} parent=0 // pred_fallthru
    _
  // Predicated region
  $region18: #{tpu_custom_call.1} parent=0 // pred_check
    _
  $region19: #{tpu_custom_call.1} parent=0 // pred_check_branch
    %20 = sbr.rel (0) target = $region21
  $region20: #{tpu_custom_call.1} parent=0 // pred_region
    _
  $region21: #{tpu_custom_call.1} parent=0 // pred_fallthru
    _
  // Predicated region
  $region22: #{tpu_custom_call.1} parent=0 // pred_check
    _
  $region23: #{tpu_custom_call.1} parent=0 // pred_check_branch
    %22 = sbr.rel (0) target = $region25
  $region24: #{tpu_custom_call.1} parent=0 // pred_region
    _
  $region25: #{tpu_custom_call.1} parent=0 // pred_fallthru
    _
  %p23 = scmp.eq.s32.totalorder 0, 0
  // Predicated region
  $region26: #{tpu_custom_call.1} parent=0 // pred_check
    %p24 = pneg %p23
  $region27: #{tpu_custom_call.1} parent=0 // pred_check_branch
    %26 = sbr.rel (%p24) target = $region29
  $region28: #{tpu_custom_call.1} parent=0 // pred_region
    %vm27 = vcmask 7168
    %28 = vst.msk [vmem:[#allocation2] sm:$0xff] %vm27, -inf
    %29 = vst.msk [vmem:[#allocation3] sm:$0xff] %vm27, inf
  $region29: #{tpu_custom_call.1} parent=0 // pred_fallthru
    _
  %v30 = vld [vmem:[%s0] sm:$0xff]
  %v31 = vld [vmem:[%s1] sm:$0xff]
  %32 = vmatprep.subr.mxu0 0.0
  %v33 = vand.u32 %v31, 4294901760
  %34 = vmatpush1.xpose.msra.mxu0 %v33
  %35 = vmatprep.subr.mxu0 0.0
  %36 = vmatpush1.xpose.msra.mxu0 0.0
  %37 = vmatprep.subr.mxu0 0.0
  %38 = vmatpush1.xpose.msra.mxu0 0.0
  %39 = vmatprep.subr.mxu0 0.0
  %40 = vmatpush1.xpose.msra.mxu0 0.0
  %41 = vmatprep.subr.mxu0 0.0
  %42 = vmatpush1.xpose.msra.mxu0 0.0
  %43 = vmatprep.subr.mxu0 0.0
  %44 = vmatpush1.xpose.msra.mxu0 0.0
  %45 = vmatprep.subr.mxu0 0.0
  %46 = vmatpush1.xpose.msra.mxu0 0.0
  %47 = vmatprep.subr.mxu0 0.0
  %48 = vmatpush1.xpose.msra.mxu0 0.0
  %49 = vmatprep.subr.mxu0 0.0
  %50 = vmatpush1.xpose.msra.mxu0 0.0
  %51 = vmatprep.subr.mxu0 0.0
  %52 = vmatpush1.xpose.msra.mxu0 0.0
  %53 = vmatprep.subr.mxu0 0.0
  %54 = vmatpush1.xpose.msra.mxu0 0.0
  %55 = vmatprep.subr.mxu0 0.0
  %56 = vmatpush1.xpose.msra.mxu0 0.0
  %57 = vmatprep.subr.mxu0 0.0
  %58 = vmatpush1.xpose.msra.mxu0 0.0
  %59 = vmatprep.subr.mxu0 0.0
  %60 = vmatpush1.xpose.msra.mxu0 0.0
  %61 = vmatprep.subr.mxu0 0.0
  %62 = vmatpush1.xpose.msra.mxu0 0.0
  %63 = vmatprep.subr.mxu0 0.0
  %64 = vmatpush1.xpose.msra.mxu0 0.0
  %65 = vmatprep.subr.mxu0 0.0
  %66 = vmatpush1.xpose.msra.mxu0 0.0
  %67 = vmatprep.subr.mxu0 0.0
  %68 = vmatpush1.xpose.msra.mxu0 0.0
  %69 = vmatprep.subr.mxu0 0.0
  %70 = vmatpush1.xpose.msra.mxu0 0.0
  %71 = vmatprep.subr.mxu0 0.0
  %72 = vmatpush1.xpose.msra.mxu0 0.0
  %73 = vmatprep.subr.mxu0 0.0
  %74 = vmatpush1.xpose.msra.mxu0 0.0
  %75 = vmatprep.subr.mxu0 0.0
  %76 = vmatpush1.xpose.msra.mxu0 0.0
  %77 = vmatprep.subr.mxu0 0.0
  %78 = vmatpush1.xpose.msra.mxu0 0.0
  %79 = vmatprep.subr.mxu0 0.0
  %80 = vmatpush1.xpose.msra.mxu0 0.0
  %81 = vmatprep.subr.mxu0 0.0
  %82 = vmatpush1.xpose.msra.mxu0 0.0
  %83 = vmatprep.subr.mxu0 0.0
  %84 = vmatpush1.xpose.msra.mxu0 0.0
  %85 = vmatprep.subr.mxu0 0.0
  %86 = vmatpush1.xpose.msra.mxu0 0.0
  %87 = vmatprep.subr.mxu0 0.0
  %88 = vmatpush1.xpose.msra.mxu0 0.0
  %89 = vmatprep.subr.mxu0 0.0
  %90 = vmatpush1.xpose.msra.mxu0 0.0
  %91 = vmatprep.subr.mxu0 0.0
  %92 = vmatpush1.xpose.msra.mxu0 0.0
  %93 = vmatprep.subr.mxu0 0.0
  %94 = vmatpush1.xpose.msra.mxu0 0.0
  %95 = vmatprep.subr.mxu0 0.0
  %96 = vmatpush1.xpose.msra.mxu0 0.0
  %97 = vmatprep.mubr.f32.mxu0 0.0
  %v98 = vand.u32 %v30, 4294901760
  %v99 = vsub.f32 %v30, %v98
  %v100 = vand.u32 %v99, 4294901760
  %v101 = vsub.f32 %v99, %v100
  %v102 = vand.u32 %v101, 4294901760
  %103 = vmatmul.mubr.f32.gmra.mrb[0].mxu0 %v102
  %v104 = vpop.f32.mrb[0].mxu0
  %v105 = vadd.f32 0.0, %v104
  %v106 = vpop.f32.mrb[0].mxu0
  %107 = vdwg.mxu0
  %108 = vmatprep.subr.mxu0 0.0
  %v109 = vand.u32 %v31, 4294901760
  %v110 = vsub.f32 %v31, %v109
  %v111 = vand.u32 %v110, 4294901760
  %v112 = vsub.f32 %v110, %v111
  %v113 = vand.u32 %v112, 4294901760
  %114 = vmatpush1.xpose.msra.mxu0 %v113
  %115 = vmatprep.subr.mxu0 0.0
  %116 = vmatpush1.xpose.msra.mxu0 0.0
  %117 = vmatprep.subr.mxu0 0.0
  %118 = vmatpush1.xpose.msra.mxu0 0.0
  %119 = vmatprep.subr.mxu0 0.0
  %120 = vmatpush1.xpose.msra.mxu0 0.0
  %121 = vmatprep.subr.mxu0 0.0
  %122 = vmatpush1.xpose.msra.mxu0 0.0
  %123 = vmatprep.subr.mxu0 0.0
  %124 = vmatpush1.xpose.msra.mxu0 0.0
  %125 = vmatprep.subr.mxu0 0.0
  %126 = vmatpush1.xpose.msra.mxu0 0.0
  %127 = vmatprep.subr.mxu0 0.0
  %128 = vmatpush1.xpose.msra.mxu0 0.0
  %129 = vmatprep.subr.mxu0 0.0
  %130 = vmatpush1.xpose.msra.mxu0 0.0
  %131 = vmatprep.subr.mxu0 0.0
  %132 = vmatpush1.xpose.msra.mxu0 0.0
  %133 = vmatprep.subr.mxu0 0.0
  %134 = vmatpush1.xpose.msra.mxu0 0.0
  %135 = vmatprep.subr.mxu0 0.0
  %136 = vmatpush1.xpose.msra.mxu0 0.0
  %137 = vmatprep.subr.mxu0 0.0
  %138 = vmatpush1.xpose.msra.mxu0 0.0
  %139 = vmatprep.subr.mxu0 0.0
  %140 = vmatpush1.xpose.msra.mxu0 0.0
  %141 = vmatprep.subr.mxu0 0.0
  %142 = vmatpush1.xpose.msra.mxu0 0.0
  %143 = vmatprep.subr.mxu0 0.0
  %144 = vmatpush1.xpose.msra.mxu0 0.0
  %145 = vmatprep.subr.mxu0 0.0
  %146 = vmatpush1.xpose.msra.mxu0 0.0
  %147 = vmatprep.subr.mxu0 0.0
  %148 = vmatpush1.xpose.msra.mxu0 0.0
  %149 = vmatprep.subr.mxu0 0.0
  %150 = vmatpush1.xpose.msra.mxu0 0.0
  %151 = vmatprep.subr.mxu0 0.0
  %152 = vmatpush1.xpose.msra.mxu0 0.0
  %153 = vmatprep.subr.mxu0 0.0
  %154 = vmatpush1.xpose.msra.mxu0 0.0
  %155 = vmatprep.subr.mxu0 0.0
  %156 = vmatpush1.xpose.msra.mxu0 0.0
  %157 = vmatprep.subr.mxu0 0.0
  %158 = vmatpush1.xpose.msra.mxu0 0.0
  %159 = vmatprep.subr.mxu0 0.0
  %160 = vmatpush1.xpose.msra.mxu0 0.0
  %161 = vmatprep.subr.mxu0 0.0
  %162 = vmatpush1.xpose.msra.mxu0 0.0
  %163 = vmatprep.subr.mxu0 0.0
  %164 = vmatpush1.xpose.msra.mxu0 0.0
  %165 = vmatprep.subr.mxu0 0.0
  %166 = vmatpush1.xpose.msra.mxu0 0.0
  %167 = vmatprep.subr.mxu0 0.0
  %168 = vmatpush1.xpose.msra.mxu0 0.0
  %169 = vmatprep.subr.mxu0 0.0
  %170 = vmatpush1.xpose.msra.mxu0 0.0
  %171 = vmatprep.subr.mxu0 0.0
  %172 = vmatpush1.xpose.msra.mxu0 0.0
  %173 = vmatprep.subr.mxu0 0.0
  %174 = vmatpush1.xpose.msra.mxu0 0.0
  %175 = vmatprep.subr.mxu0 0.0
  %176 = vmatpush1.xpose.msra.mxu0 0.0
  %177 = vmatprep.mubr.f32.mxu0 0.0
  %v178 = vand.u32 %v30, 4294901760
  %179 = vmatmul.mubr.f32.gmra.mrb[0].mxu0 %v178
  %v180 = vpop.f32.mrb[0].mxu0
  %v181 = vadd.f32 %v105, %v180
  %v182 = vpop.f32.mrb[0].mxu0
  %183 = vdwg.mxu0
  %184 = vmatprep.subr.mxu0 0.0
  %v185 = vand.u32 %v31, 4294901760
  %v186 = vsub.f32 %v31, %v185
  %187 = vmatpush1.xpose.msra.mxu0 %v186
  %188 = vmatprep.subr.mxu0 0.0
  %189 = vmatpush1.xpose.msra.mxu0 0.0
  %190 = vmatprep.subr.mxu0 0.0
  %191 = vmatpush1.xpose.msra.mxu0 0.0
  %192 = vmatprep.subr.mxu0 0.0
  %193 = vmatpush1.xpose.msra.mxu0 0.0
  %194 = vmatprep.subr.mxu0 0.0
  %195 = vmatpush1.xpose.msra.mxu0 0.0
  %196 = vmatprep.subr.mxu0 0.0
  %197 = vmatpush1.xpose.msra.mxu0 0.0
  %198 = vmatprep.subr.mxu0 0.0
  %199 = vmatpush1.xpose.msra.mxu0 0.0
  %200 = vmatprep.subr.mxu0 0.0
  %201 = vmatpush1.xpose.msra.mxu0 0.0
  %202 = vmatprep.subr.mxu0 0.0
  %203 = vmatpush1.xpose.msra.mxu0 0.0
  %204 = vmatprep.subr.mxu0 0.0
  %205 = vmatpush1.xpose.msra.mxu0 0.0
  %206 = vmatprep.subr.mxu0 0.0
  %207 = vmatpush1.xpose.msra.mxu0 0.0
  %208 = vmatprep.subr.mxu0 0.0
  %209 = vmatpush1.xpose.msra.mxu0 0.0
  %210 = vmatprep.subr.mxu0 0.0
  %211 = vmatpush1.xpose.msra.mxu0 0.0
  %212 = vmatprep.subr.mxu0 0.0
  %213 = vmatpush1.xpose.msra.mxu0 0.0
  %214 = vmatprep.subr.mxu0 0.0
  %215 = vmatpush1.xpose.msra.mxu0 0.0
  %216 = vmatprep.subr.mxu0 0.0
  %217 = vmatpush1.xpose.msra.mxu0 0.0
  %218 = vmatprep.subr.mxu0 0.0
  %219 = vmatpush1.xpose.msra.mxu0 0.0
  %220 = vmatprep.subr.mxu0 0.0
  %221 = vmatpush1.xpose.msra.mxu0 0.0
  %222 = vmatprep.subr.mxu0 0.0
  %223 = vmatpush1.xpose.msra.mxu0 0.0
  %224 = vmatprep.subr.mxu0 0.0
  %225 = vmatpush1.xpose.msra.mxu0 0.0
  %226 = vmatprep.subr.mxu0 0.0
  %227 = vmatpush1.xpose.msra.mxu0 0.0
  %228 = vmatprep.subr.mxu0 0.0
  %229 = vmatpush1.xpose.msra.mxu0 0.0
  %230 = vmatprep.subr.mxu0 0.0
  %231 = vmatpush1.xpose.msra.mxu0 0.0
  %232 = vmatprep.subr.mxu0 0.0
  %233 = vmatpush1.xpose.msra.mxu0 0.0
  %234 = vmatprep.subr.mxu0 0.0
  %235 = vmatpush1.xpose.msra.mxu0 0.0
  %236 = vmatprep.subr.mxu0 0.0
  %237 = vmatpush1.xpose.msra.mxu0 0.0
  %238 = vmatprep.subr.mxu0 0.0
  %239 = vmatpush1.xpose.msra.mxu0 0.0
  %240 = vmatprep.subr.mxu0 0.0
  %241 = vmatpush1.xpose.msra.mxu0 0.0
  %242 = vmatprep.subr.mxu0 0.0
  %243 = vmatpush1.xpose.msra.mxu0 0.0
  %244 = vmatprep.subr.mxu0 0.0
  %245 = vmatpush1.xpose.msra.mxu0 0.0
  %246 = vmatprep.subr.mxu0 0.0
  %247 = vmatpush1.xpose.msra.mxu0 0.0
  %248 = vmatprep.subr.mxu0 0.0
  %249 = vmatpush1.xpose.msra.mxu0 0.0
  %250 = vmatprep.mubr.f32.mxu0 0.0
  %v251 = vand.u32 %v30, 4294901760
  %v252 = vsub.f32 %v30, %v251
  %253 = vmatmul.mubr.f32.gmra.mrb[0].mxu0 %v252
  %v254 = vpop.f32.mrb[0].mxu0
  %v255 = vadd.f32 %v181, %v254
  %v256 = vpop.f32.mrb[0].mxu0
  %257 = vdwg.mxu0
  %258 = vmatprep.subr.mxu0 0.0
  %v259 = vand.u32 %v31, 4294901760
  %260 = vmatpush1.xpose.msra.mxu0 %v259
  %261 = vmatprep.subr.mxu0 0.0
  %262 = vmatpush1.xpose.msra.mxu0 0.0
  %263 = vmatprep.subr.mxu0 0.0
  %264 = vmatpush1.xpose.msra.mxu0 0.0
  %265 = vmatprep.subr.mxu0 0.0
  %266 = vmatpush1.xpose.msra.mxu0 0.0
  %267 = vmatprep.subr.mxu0 0.0
  %268 = vmatpush1.xpose.msra.mxu0 0.0
  %269 = vmatprep.subr.mxu0 0.0
  %270 = vmatpush1.xpose.msra.mxu0 0.0
  %271 = vmatprep.subr.mxu0 0.0
  %272 = vmatpush1.xpose.msra.mxu0 0.0
  %273 = vmatprep.subr.mxu0 0.0
  %274 = vmatpush1.xpose.msra.mxu0 0.0
  %275 = vmatprep.subr.mxu0 0.0
  %276 = vmatpush1.xpose.msra.mxu0 0.0
  %277 = vmatprep.subr.mxu0 0.0
  %278 = vmatpush1.xpose.msra.mxu0 0.0
  %279 = vmatprep.subr.mxu0 0.0
  %280 = vmatpush1.xpose.msra.mxu0 0.0
  %281 = vmatprep.subr.mxu0 0.0
  %282 = vmatpush1.xpose.msra.mxu0 0.0
  %283 = vmatprep.subr.mxu0 0.0
  %284 = vmatpush1.xpose.msra.mxu0 0.0
  %285 = vmatprep.subr.mxu0 0.0
  %286 = vmatpush1.xpose.msra.mxu0 0.0
  %287 = vmatprep.subr.mxu0 0.0
  %288 = vmatpush1.xpose.msra.mxu0 0.0
  %289 = vmatprep.subr.mxu0 0.0
  %290 = vmatpush1.xpose.msra.mxu0 0.0
  %291 = vmatprep.subr.mxu0 0.0
  %292 = vmatpush1.xpose.msra.mxu0 0.0
  %293 = vmatprep.subr.mxu0 0.0
  %294 = vmatpush1.xpose.msra.mxu0 0.0
  %295 = vmatprep.subr.mxu0 0.0
  %296 = vmatpush1.xpose.msra.mxu0 0.0
  %297 = vmatprep.subr.mxu0 0.0
  %298 = vmatpush1.xpose.msra.mxu0 0.0
  %299 = vmatprep.subr.mxu0 0.0
  %300 = vmatpush1.xpose.msra.mxu0 0.0
  %301 = vmatprep.subr.mxu0 0.0
  %302 = vmatpush1.xpose.msra.mxu0 0.0
  %303 = vmatprep.subr.mxu0 0.0
  %304 = vmatpush1.xpose.msra.mxu0 0.0
  %305 = vmatprep.subr.mxu0 0.0
  %306 = vmatpush1.xpose.msra.mxu0 0.0
  %307 = vmatprep.subr.mxu0 0.0
  %308 = vmatpush1.xpose.msra.mxu0 0.0
  %309 = vmatprep.subr.mxu0 0.0
  %310 = vmatpush1.xpose.msra.mxu0 0.0
  %311 = vmatprep.subr.mxu0 0.0
  %312 = vmatpush1.xpose.msra.mxu0 0.0
  %313 = vmatprep.subr.mxu0 0.0
  %314 = vmatpush1.xpose.msra.mxu0 0.0
  %315 = vmatprep.subr.mxu0 0.0
  %316 = vmatpush1.xpose.msra.mxu0 0.0
  %317 = vmatprep.subr.mxu0 0.0
  %318 = vmatpush1.xpose.msra.mxu0 0.0
  %319 = vmatprep.subr.mxu0 0.0
  %320 = vmatpush1.xpose.msra.mxu0 0.0
  %321 = vmatprep.subr.mxu0 0.0
  %322 = vmatpush1.xpose.msra.mxu0 0.0
  %323 = vmatprep.mubr.f32.mxu0 0.0
  %v324 = vand.u32 %v30, 4294901760
  %v325 = vsub.f32 %v30, %v324
  %v326 = vand.u32 %v325, 4294901760
  %327 = vmatmul.mubr.f32.gmra.mrb[0].mxu0 %v326
  %v328 = vpop.f32.mrb[0].mxu0
  %v329 = vadd.f32 %v255, %v328
  %v330 = vpop.f32.mrb[0].mxu0
  %331 = vdwg.mxu0
  %332 = vmatprep.subr.mxu0 0.0
  %v333 = vand.u32 %v31, 4294901760
  %v334 = vsub.f32 %v31, %v333
  %v335 = vand.u32 %v334, 4294901760
  %336 = vmatpush1.xpose.msra.mxu0 %v335
  %337 = vmatprep.subr.mxu0 0.0
  %338 = vmatpush1.xpose.msra.mxu0 0.0
  %339 = vmatprep.subr.mxu0 0.0
  %340 = vmatpush1.xpose.msra.mxu0 0.0
  %341 = vmatprep.subr.mxu0 0.0
  %342 = vmatpush1.xpose.msra.mxu0 0.0
  %343 = vmatprep.subr.mxu0 0.0
  %344 = vmatpush1.xpose.msra.mxu0 0.0
  %345 = vmatprep.subr.mxu0 0.0
  %346 = vmatpush1.xpose.msra.mxu0 0.0
  %347 = vmatprep.subr.mxu0 0.0
  %348 = vmatpush1.xpose.msra.mxu0 0.0
  %349 = vmatprep.subr.mxu0 0.0
  %350 = vmatpush1.xpose.msra.mxu0 0.0
  %351 = vmatprep.subr.mxu0 0.0
  %352 = vmatpush1.xpose.msra.mxu0 0.0
  %353 = vmatprep.subr.mxu0 0.0
  %354 = vmatpush1.xpose.msra.mxu0 0.0
  %355 = vmatprep.subr.mxu0 0.0
  %356 = vmatpush1.xpose.msra.mxu0 0.0
  %357 = vmatprep.subr.mxu0 0.0
  %358 = vmatpush1.xpose.msra.mxu0 0.0
  %359 = vmatprep.subr.mxu0 0.0
  %360 = vmatpush1.xpose.msra.mxu0 0.0
  %361 = vmatprep.subr.mxu0 0.0
  %362 = vmatpush1.xpose.msra.mxu0 0.0
  %363 = vmatprep.subr.mxu0 0.0
  %364 = vmatpush1.xpose.msra.mxu0 0.0
  %365 = vmatprep.subr.mxu0 0.0
  %366 = vmatpush1.xpose.msra.mxu0 0.0
  %367 = vmatprep.subr.mxu0 0.0
  %368 = vmatpush1.xpose.msra.mxu0 0.0
  %369 = vmatprep.subr.mxu0 0.0
  %370 = vmatpush1.xpose.msra.mxu0 0.0
  %371 = vmatprep.subr.mxu0 0.0
  %372 = vmatpush1.xpose.msra.mxu0 0.0
  %373 = vmatprep.subr.mxu0 0.0
  %374 = vmatpush1.xpose.msra.mxu0 0.0
  %375 = vmatprep.subr.mxu0 0.0
  %376 = vmatpush1.xpose.msra.mxu0 0.0
  %377 = vmatprep.subr.mxu0 0.0
  %378 = vmatpush1.xpose.msra.mxu0 0.0
  %379 = vmatprep.subr.mxu0 0.0
  %380 = vmatpush1.xpose.msra.mxu0 0.0
  %381 = vmatprep.subr.mxu0 0.0
  %382 = vmatpush1.xpose.msra.mxu0 0.0
  %383 = vmatprep.subr.mxu0 0.0
  %384 = vmatpush1.xpose.msra.mxu0 0.0
  %385 = vmatprep.subr.mxu0 0.0
  %386 = vmatpush1.xpose.msra.mxu0 0.0
  %387 = vmatprep.subr.mxu0 0.0
  %388 = vmatpush1.xpose.msra.mxu0 0.0
  %389 = vmatprep.subr.mxu0 0.0
  %390 = vmatpush1.xpose.msra.mxu0 0.0
  %391 = vmatprep.subr.mxu0 0.0
  %392 = vmatpush1.xpose.msra.mxu0 0.0
  %393 = vmatprep.subr.mxu0 0.0
  %394 = vmatpush1.xpose.msra.mxu0 0.0
  %395 = vmatprep.subr.mxu0 0.0
  %396 = vmatpush1.xpose.msra.mxu0 0.0
  %397 = vmatprep.subr.mxu0 0.0
  %398 = vmatpush1.xpose.msra.mxu0 0.0
  %399 = vmatprep.mubr.f32.mxu0 0.0
  %v400 = vand.u32 %v30, 4294901760
  %401 = vmatmul.mubr.f32.gmra.mrb[0].mxu0 %v400
  %v402 = vpop.f32.mrb[0].mxu0
  %v403 = vadd.f32 %v329, %v402
  %v404 = vpop.f32.mrb[0].mxu0
  %405 = vdwg.mxu0
  %406 = vmatprep.subr.mxu0 0.0
  %v407 = vand.u32 %v31, 4294901760
  %408 = vmatpush1.xpose.msra.mxu0 %v407
  %409 = vmatprep.subr.mxu0 0.0
  %410 = vmatpush1.xpose.msra.mxu0 0.0
  %411 = vmatprep.subr.mxu0 0.0
  %412 = vmatpush1.xpose.msra.mxu0 0.0
  %413 = vmatprep.subr.mxu0 0.0
  %414 = vmatpush1.xpose.msra.mxu0 0.0
  %415 = vmatprep.subr.mxu0 0.0
  %416 = vmatpush1.xpose.msra.mxu0 0.0
  %417 = vmatprep.subr.mxu0 0.0
  %418 = vmatpush1.xpose.msra.mxu0 0.0
  %419 = vmatprep.subr.mxu0 0.0
  %420 = vmatpush1.xpose.msra.mxu0 0.0
  %421 = vmatprep.subr.mxu0 0.0
  %422 = vmatpush1.xpose.msra.mxu0 0.0
  %423 = vmatprep.subr.mxu0 0.0
  %424 = vmatpush1.xpose.msra.mxu0 0.0
  %425 = vmatprep.subr.mxu0 0.0
  %426 = vmatpush1.xpose.msra.mxu0 0.0
  %427 = vmatprep.subr.mxu0 0.0
  %428 = vmatpush1.xpose.msra.mxu0 0.0
  %429 = vmatprep.subr.mxu0 0.0
  %430 = vmatpush1.xpose.msra.mxu0 0.0
  %431 = vmatprep.subr.mxu0 0.0
  %432 = vmatpush1.xpose.msra.mxu0 0.0
  %433 = vmatprep.subr.mxu0 0.0
  %434 = vmatpush1.xpose.msra.mxu0 0.0
  %435 = vmatprep.subr.mxu0 0.0
  %436 = vmatpush1.xpose.msra.mxu0 0.0
  %437 = vmatprep.subr.mxu0 0.0
  %438 = vmatpush1.xpose.msra.mxu0 0.0
  %439 = vmatprep.subr.mxu0 0.0
  %440 = vmatpush1.xpose.msra.mxu0 0.0
  %441 = vmatprep.subr.mxu0 0.0
  %442 = vmatpush1.xpose.msra.mxu0 0.0
  %443 = vmatprep.subr.mxu0 0.0
  %444 = vmatpush1.xpose.msra.mxu0 0.0
  %445 = vmatprep.subr.mxu0 0.0
  %446 = vmatpush1.xpose.msra.mxu0 0.0
  %447 = vmatprep.subr.mxu0 0.0
  %448 = vmatpush1.xpose.msra.mxu0 0.0
  %449 = vmatprep.subr.mxu0 0.0
  %450 = vmatpush1.xpose.msra.mxu0 0.0
  %451 = vmatprep.subr.mxu0 0.0
  %452 = vmatpush1.xpose.msra.mxu0 0.0
  %453 = vmatprep.subr.mxu0 0.0
  %454 = vmatpush1.xpose.msra.mxu0 0.0
  %455 = vmatprep.subr.mxu0 0.0
  %456 = vmatpush1.xpose.msra.mxu0 0.0
  %457 = vmatprep.subr.mxu0 0.0
  %458 = vmatpush1.xpose.msra.mxu0 0.0
  %459 = vmatprep.subr.mxu0 0.0
  %460 = vmatpush1.xpose.msra.mxu0 0.0
  %461 = vmatprep.subr.mxu0 0.0
  %462 = vmatpush1.xpose.msra.mxu0 0.0
  %463 = vmatprep.subr.mxu0 0.0
  %464 = vmatpush1.xpose.msra.mxu0 0.0
  %465 = vmatprep.subr.mxu0 0.0
  %466 = vmatpush1.xpose.msra.mxu0 0.0
  %467 = vmatprep.subr.mxu0 0.0
  %468 = vmatpush1.xpose.msra.mxu0 0.0
  %469 = vmatprep.subr.mxu0 0.0
  %470 = vmatpush1.xpose.msra.mxu0 0.0
  %471 = vmatprep.mubr.f32.mxu0 0.0
  %v472 = vand.u32 %v30, 4294901760
  %473 = vmatmul.mubr.f32.gmra.mrb[0].mxu0 %v472
  %v474 = vpop.f32.mrb[0].mxu0
  %v475 = vadd.f32 %v403, %v474
  %v476 = vpop.f32.mrb[0].mxu0
  %477 = vdwg.mxu0
  %v478 = vld [vmem:[%s2] sm:$0xff]
  %v479 = vld [vmem:[%s3] sm:$0x1]
  %481 = vset.pattern.permute.xlu0 0
  %482 = vperm.xlu0 %481, %v478
  %v483 = vpop.permute.xlu0 %482
  %v486 = vlaneseq
  %v487 = vshrl.u32 %v486, 7
  %v488 = vsub.s32 0, %v487
  %v489 = vrot.slane %v479, %v488
  %v491 = vadd.f32 %v483, %v489
  %v492 = vmul.f32 %v475, 2.0
  %v493 = vsub.f32 %v491, %v492
  %v494 = vld [vmem:[%s4] sm:$0xff]
  %v495 = vld [vmem:[%s5] sm:$0x1]
  %496 = vset.pattern.permute.xlu0 0
  %497 = vperm.xlu0 %496, %v494
  %v498 = vpop.permute.xlu0 %497
  %v499 = vlaneseq
  %v500 = vshrl.u32 %v499, 7
  %v501 = vsub.s32 0, %v500
  %v502 = vrot.slane %v495, %v501
  %vm503 = vcmp.eq.s32.totalorder %v498, %v502
  %s504 = smul.u32 0, 8
  %v505 = vlaneseq
  %v506 = vand.u32 %v505, 127
  %v507 = vstv %s504
  %v508 = vadd.s32 %v507, %v506
  %vm509 = vcmp.lt.s32.totalorder %v508, 8
  %vm510 = vmand %vm503, %vm509
  %v511 = vsel %vm510, %v493, -inf
  %vm512 = vmxor %vm503, 1
  %vm513 = vmand %vm512, %vm509
  %v514 = vsel %vm513, %v493, inf
  %v515 = vld [vmem:[#allocation2] sm:$0xff]
  %vm516 = vcmask 64512
  %v517 = vsel %vm516, %v511, -inf
  %518 = vmax.xlane.f32.xlu0 %v517
  %v519 = vpop.xlane.xlu0 %518
  %v520 = vmax.f32 %v515, %v519
  %vm521 = vcmask 7168
  %522 = vst.msk [vmem:[#allocation2] sm:$0xff] %vm521, %v520
  %v523 = vld [vmem:[#allocation3] sm:$0xff]
  %v524 = vsel %vm516, %v514, inf
  %525 = vmin.xlane.f32.xlu0 %v524
  %v526 = vpop.xlane.xlu0 %525
  %v527 = vmin.f32 %v523, %v526
  %528 = vst.msk [vmem:[#allocation3] sm:$0xff] %vm521, %v527
  // Predicated region
  $region30: #{tpu_custom_call.1} parent=0 // pred_check
    %p529 = pneg %p23
  $region31: #{tpu_custom_call.1} parent=0 // pred_check_branch
    %531 = sbr.rel (%p529) target = $region33
  $region32: #{tpu_custom_call.1} parent=0 // pred_region
    %v532 = vld [vmem:[#allocation2] sm:$0xff]
    %v533 = vmax.f32 %v532, 1e-12
    %v534 = vrsqrt.pop %v533
    %v535 = vmul.f32 %v533, %v534
    %vm536 = vcmp.eq.f32.partialorder %v533, inf
    %v537 = vsel %vm536, %v533, %v535
    %vm538 = vcmp.eq.f32.partialorder %v533, 0.0
    %v539 = vand.u32 %v533, 2147483648
    %v540 = vsel %vm538, %v539, %v537
    %v541 = vld [vmem:[#allocation3] sm:$0xff]
    %v542 = vmax.f32 %v541, 1e-12
    %v543 = vrsqrt.pop %v542
    %v544 = vmul.f32 %v542, %v543
    %vm545 = vcmp.eq.f32.partialorder %v542, inf
    %v546 = vsel %vm545, %v542, %v544
    %vm547 = vcmp.eq.f32.partialorder %v542, 0.0
    %v548 = vand.u32 %v542, 2147483648
    %v549 = vsel %vm547, %v548, %v546
    %v550 = vsub.f32 %v549, %v540
    %v551 = vsub.f32 0.3, %v550
    %v552 = vmax.f32 %v551, 0.0
    %s553 = smul.u32 0, 8
    %v554 = vlaneseq
    %v555 = vshrl.u32 %v554, 7
    %v556 = vstv %s553
    %v557 = vadd.s32 %v556, %v555
    %vm558 = vcmp.lt.s32.totalorder %v557, 8
    %v559 = vsel %vm558, %v552, 0.0
    %560 = vst.msk [vmem:[%s6] sm:$0xff] %vm521, %v559
  $region33: #{tpu_custom_call.1} parent=0 // pred_fallthru
    _
  // Predicated region
  $region34: #{tpu_custom_call.1} parent=0 // pred_check
    _
  $region35: #{tpu_custom_call.1} parent=0 // pred_check_branch
    %562 = sbr.rel (0) target = $region37
  $region36: #{tpu_custom_call.1} parent=0 // pred_region
    _
  $region37: #{tpu_custom_call.1} parent=0 // pred_fallthru
    _
  // Predicated region
  $region38: #{tpu_custom_call.1} parent=0 // pred_check
    _
  $region39: #{tpu_custom_call.1} parent=0 // pred_check_branch
    %564 = sbr.rel (0) target = $region41
  $region40: #{tpu_custom_call.1} parent=0 // pred_region
    _
  $region41: #{tpu_custom_call.1} parent=0 // pred_fallthru
    _

</llo_original>
